<compile_context>
chip_gen: v7x
topology: tpu7x:2x2x1
jax: 0.10.0
libtpu: 0.0.40
codegen_flags: <defaults>
</compile_context>

<pallas_src>
import functools
import math
import numpy as np

import jax
import jax.numpy as jnp
from jax.experimental import pallas as pl
from jax.experimental.pallas import tpu as pltpu


# ----------------------------------------------------------------------------
# Wavelet matrices (exact reproduction of DWT_2D.get_matrix for 'haar').
# ----------------------------------------------------------------------------
def make_dwt_matrices(H, W, dtype=jnp.float32):
    c = 1.0 / math.sqrt(2.0)
    band_low = [c, c]           # pywt.Wavelet('haar').rec_lo
    band_high = [c, -c]         # pywt.Wavelet('haar').rec_hi
    band_length = 2
    band_length_half = 1

    L1 = max(H, W)
    L = L1 // 2
    matrix_g = np.zeros((L1 - L, L1 + band_length - 2))
    if H % 2 == 0:
        matrix_h = np.zeros((L, L1 + band_length - 2))
    else:
        matrix_h = np.zeros((L + 1, L1 + band_length - 2))
    end = None if band_length_half == 1 else -band_length_half + 1

    index = 0
    for i in range(L):
        for j in range(band_length):
            matrix_h[i, index + j] = band_low[j]
        index += 2
    matrix_h_0 = matrix_h[0:math.floor(H / 2 + 1), 0:H + band_length - 2]
    matrix_h_1 = matrix_h[0:math.floor(W / 2 + 1), 0:W + band_length - 2]

    index = 0
    # NOTE: one fewer row filled than rows available, matching the reference
    # code -> the last high-pass row (and, transposed, the last high-pass
    # column) is all zeros.  Keep it that way.
    for i in range(L1 - L - 1):
        for j in range(band_length):
            matrix_g[i, index + j] = band_high[j]
        index += 2
    matrix_g_0 = matrix_g[0:math.floor(H / 2 + 1), 0:H + band_length - 2]
    matrix_g_1 = matrix_g[0:math.floor(W / 2 + 1), 0:W + band_length - 2]

    matrix_h_0 = matrix_h_0[:, band_length_half - 1:end]
    matrix_h_1 = np.transpose(matrix_h_1[:, band_length_half - 1:end])
    matrix_g_0 = matrix_g_0[:, band_length_half - 1:end]
    matrix_g_1 = np.transpose(matrix_g_1[:, band_length_half - 1:end])

    return (jnp.asarray(matrix_h_0, dtype),   # matrix_low_0  (H/2, H)
            jnp.asarray(matrix_h_1, dtype),   # matrix_low_1  (W, W/2)
            jnp.asarray(matrix_g_0, dtype),   # matrix_high_0 (H/2, H)
            jnp.asarray(matrix_g_1, dtype))   # matrix_high_1 (W, W/2)


# ----------------------------------------------------------------------------
# Pallas kernel: one grid step = (TB batch images) x (one H tile of Th rows).
# ----------------------------------------------------------------------------
def wpl_kernel(x_ref, m1_ref, ml0t_ref, mh0t_ref, o_ref, *, approx_recip=False):
    TB, C, Th, W = x_ref.shape
    Wh = m1_ref.shape[1] // 2
    Tq = ml0t_ref.shape[2]                          # Th // 2

    x = x_ref[...]                                  # (TB, C, Th, W)

    # ---- column pass: ONE wide MXU matmul (M = TB*C*Th folded) -------------
    xc = jnp.dot(x.reshape(TB * C * Th, W), m1_ref[...],
                 preferred_element_type=jnp.float32)             # (M, 2*Wh)

    # ---- single minor-dim transpose: rows (Th) onto the lane axis ----------
    xct = jnp.transpose(xc.reshape(TB * C, Th, 2 * Wh), (0, 2, 1))   # (TB*C, 2Wh, Th)
    xl_t = xct[:, :Wh, :].reshape(TB * C * Wh, Th)                   # (X @ ml1)^T
    xh_t = xct[:, Wh:, :].reshape(TB * C * Wh, Th)                   # (X @ mh1)^T

    # ---- row pass: three quadrant matmuls (HH is never computed) -----------
    ml0t = ml0t_ref[0]                                               # (Th, Tq)
    mh0t = mh0t_ref[0]
    ll_t = jnp.dot(xl_t, ml0t,
                   preferred_element_type=jnp.float32).reshape(TB, C, Wh, Tq)
    hl_t = jnp.dot(xl_t, mh0t,
                   preferred_element_type=jnp.float32).reshape(TB, C, Wh, Tq)
    lh_t = jnp.dot(xh_t, ml0t,
                   preferred_element_type=jnp.float32).reshape(TB, C, Wh, Tq)

    # ---- Softmax2d over channels (C is a leading axis -> cheap VPU reduce) -
    s = lh_t + hl_t
    s_max = jnp.max(s, axis=1, keepdims=True)
    e = jnp.exp(s - s_max)
    # approx=True would use the (otherwise idle) EUP slot but loosens the
    # ~1e-5 tolerance; the feedback item is applied as an opt-in switch.
    inv = pl.reciprocal(jnp.sum(e, axis=1, keepdims=True), approx=approx_recip)
    out_t = ll_t * (1.0 + e * inv)                                   # (TB, C, Wh, Tq)

    out4 = jnp.transpose(out_t, (0, 1, 3, 2))                        # (TB, C, Tq, Wh)
    if len(o_ref.shape) == 4:
        # Plain layout (..., Tq, Wh): Wh on lanes (used when flattening is not
        # worth it, e.g. tiny spatial dims or Wh already >= 128).
        o_ref[...] = out4.astype(o_ref.dtype)
    else:
        # Lane-dense store: flatten (Tq, Wh) onto the lane axis using static
        # sublane slices + one lane concatenate (both guaranteed to lower);
        # avoids masked sub-128-lane vst's and a 128/Wh-padded output buffer.
        flat = jnp.concatenate([out4[:, :, i, :] for i in range(Tq)], axis=-1)
        o_ref[...] = flat.astype(o_ref.dtype)


# ----------------------------------------------------------------------------
# VMEM-aware tiling.
# ----------------------------------------------------------------------------
def _pad(n, m):
    return -(-n // m) * m


def _padded_bytes(shape, itemsize=4):
    """(8,128)-padded VMEM footprint of an f32 buffer/value."""
    if len(shape) == 1:
        lead, sub, lane = 1, 1, shape[0]
    else:
        lead = 1
        for d in shape[:-2]:
            lead *= d
        sub, lane = shape[-2], shape[-1]
    return lead * _pad(sub, 8) * _pad(lane, 128) * itemsize


def _vmem_budget_and_limit():
    """Generation-aware VMEM budget (v5e/v6e: 128 MiB physical, v7x: 64 MiB)."""
    cap = 64 * 1024 * 1024                      # conservative default (v7x-class)
    try:
        info = pltpu.get_tpu_info()
        cap = int(getattr(info, "vmem_capacity_bytes", cap)) or cap
    except Exception:
        pass
    limit = min(cap // 2, 64 * 1024 * 1024)     # 64 MiB on v5e/v6e, 32 MiB on v7x
    budget = (limit * 3) // 4                   # headroom for compiler scratch
    return budget, limit, cap


def _working_set_bytes(TB, C, Th, W, dense_out):
    """Per-grid-step VMEM footprint with (8,128) padding and realistic liveness."""
    Wh = W // 2
    Tq = Th // 2
    inp = 2 * _padded_bytes((TB * C, Th, W))              # input block, double buffered
    xc = _padded_bytes((TB * C * Th, 2 * Wh))             # column-pass result
    xct = _padded_bytes((TB * C, 2 * Wh, Th))             # transposed
    xlh = 2 * _padded_bytes((TB * C * Wh, Th))            # XL^T, XH^T
    quads = 3 * _padded_bytes((TB * C * Wh, Tq))          # LL^T, HL^T, LH^T
    smax = 3 * _padded_bytes((TB * C, Wh, Tq))            # softmax temps / out_t
    inter = max(xc + xct, xct + xlh, xlh + quads, quads + smax)
    if dense_out:
        out = _padded_bytes((TB * C, Tq, Wh)) + 2 * _padded_bytes((TB, C, Tq * Wh))
    else:
        out = 2 * _padded_bytes((TB * C, Tq, Wh))
    filt = 2 * (_padded_bytes((W, 2 * Wh)) + 2 * _padded_bytes((Th, Tq)))
    return inp + inter + out + filt


def _choose_tiling(B, C, H, W, dense_out):
    budget, limit, cap = _vmem_budget_and_limit()

    def fits(tb, th):
        return _working_set_bytes(tb, C, th, W, dense_out) <= budget

    b_divs = [d for d in range(1, B + 1) if B % d == 0]

    # Largest batch tile at full H.
    Th = H
    TB = max([d for d in b_divs if fits(d, H)], default=0)
    if TB == 0:
        # Large-image fallback: tile the H axis.  Haar support is two rows, so
        # H tiles are fully independent given per-tile diagonal filter blocks.
        # Th is kept a multiple of 16 so reshapes/blocks stay (8,128)-friendly.
        TB = 1
        th_cands = [d for d in range(16, H, 16) if H % d == 0]
        th_fit = [d for d in th_cands if fits(1, d)]
        if th_fit:
            Th = max(th_fit)
        elif th_cands:
            Th = min(th_cands)
        # TODO(synk): if even the smallest H tile exceeds the budget (huge C*W),
        # we proceed anyway and raise the scoped-VMEM limit below.

    # Guarantee >= 2 grid steps whenever possible so both v7x TensorCores get
    # work (single-step grids leave one core idle with dimension_semantics
    # "parallel").
    def steps(tb, th):
        return (B // tb) * (H // th)

    while steps(TB, Th) < 2 and TB > 1:
        TB = max(d for d in b_divs if d < TB)
    if steps(TB, Th) < 2:
        for d in sorted([d for d in range(16, H, 16) if H % d == 0], reverse=True):
            if fits(TB, d):
                Th = d
                break

    # Lane-dense output only when the stored block's minor dim stays either the
    # full flattened spatial width or a clean multiple of 128.
    Tq, Wh = Th // 2, W // 2
    if dense_out and (H // Th) > 1 and (Tq * Wh) % 128 != 0:
        dense_out = False

    ws = _working_set_bytes(TB, C, Th, W, dense_out)
    if ws > budget:
        limit = max(limit, min((cap * 3) // 4, ws + (8 << 20)))
    return TB, Th, dense_out, limit


# ----------------------------------------------------------------------------
# Wrapper.
# ----------------------------------------------------------------------------
def wpl_forward(x, ml0, ml1, mh0, mh1, *, approx_recip=False):
    """Pallas TPU forward for WPL (haar).  Exact f32 numerics by default."""
    B, C, H, W = x.shape
    assert H % 2 == 0 and W % 2 == 0, "haar WPL kernel expects even H, W"
    Hh, Wh = ml0.shape[0], ml1.shape[1]
    assert Hh == H // 2 and Wh == W // 2

    dense_out = (Wh < 128) and (Hh * Wh >= 128)
    TB, Th, dense_out, vmem_limit = _choose_tiling(B, C, H, W, dense_out)
    Tq = Th // 2
    nT = H // Th
    grid = (B // TB, nT)

    dt = x.dtype
    # Fused column-pass filter and per-H-tile diagonal blocks of the row-pass
    # filters (all tiny; Pallas only re-fetches them when the block index
    # changes, so they are effectively loop-invariant inputs).
    m1cat = jnp.concatenate([ml1, mh1], axis=1).astype(dt)          # (W, 2*Wh)
    ml0t = ml0.astype(dt).T                                          # (H, Hh)
    mh0t = mh0.astype(dt).T
    ml0t_blk = jnp.stack([ml0t[t * Th:(t + 1) * Th, t * Tq:(t + 1) * Tq]
                          for t in range(nT)])                       # (nT, Th, Tq)
    mh0t_blk = jnp.stack([mh0t[t * Th:(t + 1) * Th, t * Tq:(t + 1) * Tq]
                          for t in range(nT)])

    in_specs = [
        pl.BlockSpec((TB, C, Th, W), lambda b, t: (b, 0, t, 0)),
        pl.BlockSpec((W, 2 * Wh), lambda b, t: (0, 0)),
        pl.BlockSpec((1, Th, Tq), lambda b, t: (t, 0, 0)),
        pl.BlockSpec((1, Th, Tq), lambda b, t: (t, 0, 0)),
    ]
    if dense_out:
        out_shape = jax.ShapeDtypeStruct((B, C, Hh * Wh), dt)
        out_specs = pl.BlockSpec((TB, C, Tq * Wh), lambda b, t: (b, 0, t))
    else:
        out_shape = jax.ShapeDtypeStruct((B, C, Hh, Wh), dt)
        out_specs = pl.BlockSpec((TB, C, Tq, Wh), lambda b, t: (b, 0, t, 0))

    out = pl.pallas_call(
        functools.partial(wpl_kernel, approx_recip=approx_recip),
        out_shape=out_shape,
        grid_spec=pltpu.PrefetchScalarGridSpec(
            num_scalar_prefetch=0,
            grid=grid,
            in_specs=in_specs,
            out_specs=out_specs,
        ),
        compiler_params=pltpu.CompilerParams(
            dimension_semantics=("parallel", "parallel"),
            vmem_limit_bytes=int(vmem_limit),
        ),
    )(x, m1cat, ml0t_blk, mh0t_blk)

    if dense_out:
        out = out.reshape(B, C, Hh, Wh)   # metadata-only reshape in XLA
    return out


def wpl_reference(x, ml0, ml1, mh0, mh1):
    """Pure-JAX reference matching the PyTorch forward."""
    L = jnp.matmul(ml0, x)       # (B, C, H/2, W)
    Hr = jnp.matmul(mh0, x)
    LL = jnp.matmul(L, ml1)      # (B, C, H/2, W/2)
    LH = jnp.matmul(L, mh1)
    HL = jnp.matmul(Hr, ml1)
    p = jax.nn.softmax(LH + HL, axis=1)   # Softmax2d == softmax over channels
    return LL + LL * p


if __name__ == "__main__":
    key = jax.random.PRNGKey(0)

    # Case 1 (B=2, C=4, 16x16): plain output layout (flattened width < 128).
    # Case 2 (B=2, C=8, 32x32): exercises the lane-dense flattened output path.
    for (B, C, H, W) in [(2, 4, 16, 16), (2, 8, 32, 32)]:
        key, sub = jax.random.split(key)
        x = jax.random.normal(sub, (B, C, H, W), dtype=jnp.float32)
        ml0, ml1, mh0, mh1 = make_dwt_matrices(H, W, jnp.float32)

        out = jax.block_until_ready(wpl_forward(x, ml0, ml1, mh0, mh1))
        ref = wpl_reference(x, ml0, ml1, mh0, mh1)

        assert out.shape == (B, C, H // 2, W // 2)
        np.testing.assert_allclose(np.asarray(out), np.asarray(ref),
                                   rtol=2e-5, atol=2e-5)

    print("KERNEL_OK")
</pallas_src>

<mosaic_0001>
module attributes {stable_mosaic.version = 11 : i64} {
  func.func @wpl_kernel(%arg0: i32, %arg1: i32, %arg2: memref<1x4x16x16xf32, #tpu.memory_space<vmem>>, %arg3: memref<16x16xf32, #tpu.memory_space<vmem>>, %arg4: memref<1x16x8xf32, #tpu.memory_space<vmem>>, %arg5: memref<1x16x8xf32, #tpu.memory_space<vmem>>, %arg6: memref<1x4x8x8xf32, #tpu.memory_space<vmem>>) attributes {dimension_semantics = [#tpu.dimension_semantics<parallel>, #tpu.dimension_semantics<parallel>], iteration_bounds = array<i64: 2, 1>, scalar_prefetch = 0 : i64, scratch_operands = 0 : i64, tpu.core_type = #tpu.core_type<tc>, window_params = [{transform_indices = @transform_0, window_bounds = array<i64: 1, 4, 16, 16>}, {pipeline_mode = #tpu.pipeline_mode<synchronous>, transform_indices = @transform_1, window_bounds = array<i64: 16, 16>}, {transform_indices = @transform_2, window_bounds = array<i64: 1, 16, 8>}, {transform_indices = @transform_3, window_bounds = array<i64: 1, 16, 8>}, {transform_indices = @transform_4, window_bounds = array<i64: 1, 4, 8, 8>}]} {
    %c0 = arith.constant 0 : index
    %c0_0 = arith.constant 0 : index
    %c0_1 = arith.constant 0 : index
    %c0_2 = arith.constant 0 : index
    %0 = vector.load %arg2[%c0, %c0_0, %c0_1, %c0_2] : memref<1x4x16x16xf32, #tpu.memory_space<vmem>>, vector<1x4x16x16xf32>
    %1 = vector.shape_cast %0 : vector<1x4x16x16xf32> to vector<64x16xf32>
    %c0_3 = arith.constant 0 : index
    %c0_4 = arith.constant 0 : index
    %2 = vector.load %arg3[%c0_3, %c0_4] : memref<16x16xf32, #tpu.memory_space<vmem>>, vector<16x16xf32>
    %cst = arith.constant dense<0.000000e+00> : vector<64x16xf32>
    %3 = tpu.matmul %1, %2, %cst {dimension_numbers = #tpu.dot_dimension_numbers<[1], [0], [0], [1], [0, 0, 1, 1], [], []>} : vector<64x16xf32>, vector<16x16xf32>, vector<64x16xf32> -> vector<64x16xf32>
    %4 = vector.shape_cast %3 : vector<64x16xf32> to vector<4x16x16xf32>
    %5 = tpu.transpose %4, [0, 2, 1] : vector<4x16x16xf32> -> vector<4x16x16xf32>
    %6 = vector.extract_strided_slice %5 {offsets = [0, 0, 0], sizes = [4, 8, 16], strides = [1, 1, 1]} : vector<4x16x16xf32> to vector<4x8x16xf32>
    %7 = vector.shape_cast %6 : vector<4x8x16xf32> to vector<32x16xf32>
    %8 = vector.extract_strided_slice %5 {offsets = [0, 8, 0], sizes = [4, 8, 16], strides = [1, 1, 1]} : vector<4x16x16xf32> to vector<4x8x16xf32>
    %9 = vector.shape_cast %8 : vector<4x8x16xf32> to vector<32x16xf32>
    %c0_5 = arith.constant 0 : index
    %c0_6 = arith.constant 0 : index
    %c0_7 = arith.constant 0 : index
    %10 = vector.load %arg4[%c0_5, %c0_6, %c0_7] : memref<1x16x8xf32, #tpu.memory_space<vmem>>, vector<1x16x8xf32>
    %11 = vector.shape_cast %10 : vector<1x16x8xf32> to vector<16x8xf32>
    %c0_8 = arith.constant 0 : index
    %c0_9 = arith.constant 0 : index
    %c0_10 = arith.constant 0 : index
    %12 = vector.load %arg5[%c0_8, %c0_9, %c0_10] : memref<1x16x8xf32, #tpu.memory_space<vmem>>, vector<1x16x8xf32>
    %13 = vector.shape_cast %12 : vector<1x16x8xf32> to vector<16x8xf32>
    %cst_11 = arith.constant dense<0.000000e+00> : vector<32x8xf32>
    %14 = tpu.matmul %7, %11, %cst_11 {dimension_numbers = #tpu.dot_dimension_numbers<[1], [0], [0], [1], [0, 0, 1, 1], [], []>} : vector<32x16xf32>, vector<16x8xf32>, vector<32x8xf32> -> vector<32x8xf32>
    %15 = vector.shape_cast %14 : vector<32x8xf32> to vector<1x4x8x8xf32>
    %cst_12 = arith.constant dense<0.000000e+00> : vector<32x8xf32>
    %16 = tpu.matmul %7, %13, %cst_12 {dimension_numbers = #tpu.dot_dimension_numbers<[1], [0], [0], [1], [0, 0, 1, 1], [], []>} : vector<32x16xf32>, vector<16x8xf32>, vector<32x8xf32> -> vector<32x8xf32>
    %17 = vector.shape_cast %16 : vector<32x8xf32> to vector<1x4x8x8xf32>
    %cst_13 = arith.constant dense<0.000000e+00> : vector<32x8xf32>
    %18 = tpu.matmul %9, %11, %cst_13 {dimension_numbers = #tpu.dot_dimension_numbers<[1], [0], [0], [1], [0, 0, 1, 1], [], []>} : vector<32x16xf32>, vector<16x8xf32>, vector<32x8xf32> -> vector<32x8xf32>
    %19 = vector.shape_cast %18 : vector<32x8xf32> to vector<1x4x8x8xf32>
    %20 = arith.addf %19, %17 : vector<1x4x8x8xf32>
    %cst_14 = arith.constant dense<0xFF800000> : vector<1x8x8xf32>
    %21 = vector.multi_reduction <maximumf>, %20, %cst_14 [1] : vector<1x4x8x8xf32> to vector<1x8x8xf32>
    %22 = vector.shape_cast %21 : vector<1x8x8xf32> to vector<1x1x8x8xf32>
    %23 = vector.broadcast %22 : vector<1x1x8x8xf32> to vector<1x4x8x8xf32>
    %24 = arith.subf %20, %23 : vector<1x4x8x8xf32>
    %25 = math.exp %24 : vector<1x4x8x8xf32>
    %cst_15 = arith.constant dense<0.000000e+00> : vector<1x8x8xf32>
    %26 = vector.multi_reduction <add>, %25, %cst_15 [1] : vector<1x4x8x8xf32> to vector<1x8x8xf32>
    %27 = vector.shape_cast %26 : vector<1x8x8xf32> to vector<1x1x8x8xf32>
    %28 = tpu.reciprocal %27 : vector<1x1x8x8xf32> -> vector<1x1x8x8xf32>
    %29 = vector.broadcast %28 : vector<1x1x8x8xf32> to vector<1x4x8x8xf32>
    %30 = arith.mulf %25, %29 : vector<1x4x8x8xf32>
    %cst_16 = arith.constant 1.000000e+00 : f32
    %31 = vector.broadcast %cst_16 : f32 to vector<1x4x8x8xf32>
    %32 = arith.addf %31, %30 : vector<1x4x8x8xf32>
    %33 = arith.mulf %15, %32 : vector<1x4x8x8xf32>
    %34 = tpu.transpose %33, [0, 1, 3, 2] : vector<1x4x8x8xf32> -> vector<1x4x8x8xf32>
    %c0_17 = arith.constant 0 : index
    %c0_18 = arith.constant 0 : index
    %c0_19 = arith.constant 0 : index
    %c0_20 = arith.constant 0 : index
    %35 = vector.load %arg6[%c0_17, %c0_18, %c0_19, %c0_20] : memref<1x4x8x8xf32, #tpu.memory_space<vmem>>, vector<1x4x8x8xf32>
    tpu.vector_store %arg6[%c0_17, %c0_18, %c0_19, %c0_20], %34 {strides = array<i32>} : memref<1x4x8x8xf32, #tpu.memory_space<vmem>>, vector<1x4x8x8xf32>,
    return
  }
  func.func @transform_0(%arg0: i32, %arg1: i32) -> (i32, i32, i32, i32) {
    %c0_i32 = arith.constant 0 : i32
    %c0_i32_0 = arith.constant 0 : i32
    %c0_i32_1 = arith.constant 0 : i32
    return %arg0, %c0_i32, %arg1, %c0_i32_0 : i32, i32, i32, i32
  }
  func.func @transform_1(%arg0: i32, %arg1: i32) -> (i32, i32) {
    %c0_i32 = arith.constant 0 : i32
    %c0_i32_0 = arith.constant 0 : i32
    %c0_i32_1 = arith.constant 0 : i32
    return %c0_i32, %c0_i32_0 : i32, i32
  }
  func.func @transform_2(%arg0: i32, %arg1: i32) -> (i32, i32, i32) {
    %c0_i32 = arith.constant 0 : i32
    %c0_i32_0 = arith.constant 0 : i32
    %c0_i32_1 = arith.constant 0 : i32
    return %arg1, %c0_i32, %c0_i32_0 : i32, i32, i32
  }
  func.func @transform_3(%arg0: i32, %arg1: i32) -> (i32, i32, i32) {
    %c0_i32 = arith.constant 0 : i32
    %c0_i32_0 = arith.constant 0 : i32
    %c0_i32_1 = arith.constant 0 : i32
    return %arg1, %c0_i32, %c0_i32_0 : i32, i32, i32
  }
  func.func @transform_4(%arg0: i32, %arg1: i32) -> (i32, i32, i32, i32) {
    %c0_i32 = arith.constant 0 : i32
    %c0_i32_0 = arith.constant 0 : i32
    %c0_i32_1 = arith.constant 0 : i32
    return %arg0, %c0_i32, %arg1, %c0_i32_0 : i32, i32, i32, i32
  }
}

</mosaic_0001>

<llo_original>
// kernel: tpu_custom_call.1
$region0: #{tpu_custom_call.1}
  #allocation0 [shape = 'u32[]', space=smem, size = 0x4, offset = 0x4, fixed_abs, tag = 'smem constant byte address 0x4 - core index']
  #allocation1 [shape = 'u32[144,128]{1,0:T(1,128)}', space=vmem, size = 0x12000, scoped, tag = 'internal scratch']
  %s0 = inlined_call_operand.hbm [shape: f32[2,4,16,16], index: 0, kind: input, shape index: {}]
  %s1 = inlined_call_operand.vmem [shape: f32[16,16], index: 1, kind: input, shape index: {}]
  %s2 = inlined_call_operand.vmem [shape: f32[1,16,8], index: 2, kind: input, shape index: {}]
  %s3 = inlined_call_operand.vmem [shape: f32[1,16,8], index: 3, kind: input, shape index: {}]
  %s4 = inlined_call_operand.hbm [shape: f32[2,4,8,8], index: 4, kind: output, shape index: {}]
  %s5 = sld [smem:[#allocation0]]
  $region53: #{tpu_custom_call.1} parent=0
    _
  %s7 = ssub.s32 1, %s5
  %s8 = scalar_select 0, %s7, %s5
  $region1: #{tpu_custom_call.1} parent=0
    #allocation2 [shape = 'u8[65536]{0}', space=vmem, size = 0x10000, scoped, tag = 'input window, operand 0']
    #allocation3 [shape = 's32[2]{0}', space=sflag, size = 0x8, scoped, tag = 'scoped memory for tpu_custom_call.1']
    #allocation4 [shape = 's32[2]{0}', space=sflag, size = 0x8, scoped, tag = 'scoped memory for tpu_custom_call.1']
    #allocation5 [shape = 'u8[32768]{0}', space=vmem, size = 0x8000, scoped, tag = 'output window, operand 0']
    %9 = vsyncpa [#allocation3], 0
    %s10 = scalar_lea.sflag [#allocation3], 1
    %11 = vsyncpa %s10, 0
    %12 = vsyncpa [#allocation4], 0
    %s13 = scalar_lea.sflag [#allocation4], 1
    %14 = vsyncpa %s13, 0
    loop: start=0, step=1, limit=4
    $region2: #{tpu_custom_call.1} parent=1 // loop_pre_header
      _
    $region3: #{tpu_custom_call.1} parent=1 // loop_header
      %s16 = sphi 0, %s20
      %p17 = scmp.ge.s32.totalorder %s16, 4
      %s23 = sphi 0, %s35
      %s24 = sphi 0, %s31
      %s25 = sphi 0, %s23
      %s26 = sphi 0, %s24
      %s27 = sphi 0, %s25
      %s28 = sphi 0, %s26
      %s40 = sphi 0, %s42
      %s43 = sphi 0, %s40
      %s44 = sphi 0, %s43
      %s60 = sphi 0, %s44
      %s64 = sphi 0, %s64
      %s66 = sphi 0, %s64
      %s67 = sphi 0, %s66
      %s81 = sphi 0, %s67
      %s87 = sphi 0, %s89
      %s90 = sphi 0, %s87
      %s91 = sphi 0, %s90
      %s107 = sphi 0, %s91
      %s113 = sphi 0, %s115
      %s116 = sphi 0, %s113
      %s117 = sphi 0, %s116
      %s133 = sphi 0, %s117
      %s141 = sphi 0, %s143
      %s144 = sphi 0, %s141
      %s145 = sphi 0, %s144
      %s161 = sphi 0, %s145
    $region4: #{tpu_custom_call.1} parent=1 // loop_header_branch
      %19 = sbr.rel (%p17) target = $region8
    $region5: #{tpu_custom_call.1} parent=1 // loop_body
      %s21 = ssub.s32 %s16, 1
      %s22 = ssub.s32 %s16, 2
      %s29 = sadd.s32 1, %s24
      %p30 = scmp.ge.s32.totalorder %s29, 1
      %s31 = scalar_select %p30, 0, %s29
      %s32 = sadd.s32 1, %s23
      %s33 = scalar_select %p30, %s32, %s23
      %p34 = scmp.ge.s32.totalorder %s33, 2
      %s35 = scalar_select %p34, 0, %s33
      %s36 = ssub.s32 %s23, %s35
      %s37 = ssub.s32 %s24, %s31
      %s38 = sor.u32 %s36, %s37
      %p39 = scmp.eq.s32.totalorder %s38, 0
      %s41 = sadd.s32 %s40, 1
      %s42 = scalar_select %p39, %s40, %s41
      %p45 = pneg %p39
      %p46 = scmp.eq.s32.totalorder %s16, 1
      %p47 = por %p45, %p46
      %p48 = scmp.ne.s32.totalorder %s40, %s43
      %p49 = scmp.eq.s32.totalorder %s16, 0
      %p50 = por %p48, %p49
      %p51 = scmp.ne.s32.totalorder %s40, %s43
      %p52 = scmp.eq.s32.totalorder %s21, 1
      %p53 = por %p51, %p52
      %p54 = scmp.ne.s32.totalorder %s43, %s44
      %p55 = scmp.eq.s32.totalorder %s21, 0
      %p56 = por %p54, %p55
      %p57 = scmp.ne.s32.totalorder %s43, %s44
      %p58 = scmp.eq.s32.totalorder %s22, 1
      %p59 = por %p57, %p58
      %p61 = scmp.ne.s32.totalorder %s44, %s60
      %p62 = scmp.eq.s32.totalorder %s22, 0
      %p63 = por %p61, %p62
      %s65 = sadd.s32 %s64, 1
      %p68 = scmp.eq.s32.totalorder %s16, 1
      %p69 = scmp.ne.s32.totalorder %s64, %s66
      %p70 = scmp.eq.s32.totalorder %s16, 0
      %p71 = por %p69, %p70
      %p72 = scmp.ne.s32.totalorder %s64, %s66
      %p73 = scmp.eq.s32.totalorder %s21, 1
      %p74 = por %p72, %p73
      %p75 = scmp.ne.s32.totalorder %s66, %s67
      %p76 = scmp.eq.s32.totalorder %s21, 0
      %p77 = por %p75, %p76
      %p78 = scmp.ne.s32.totalorder %s66, %s67
      %p79 = scmp.eq.s32.totalorder %s22, 1
      %p80 = por %p78, %p79
      %p82 = scmp.ne.s32.totalorder %s67, %s81
      %p83 = scmp.eq.s32.totalorder %s22, 0
      %p84 = por %p82, %p83
      %s85 = ssub.s32 %s24, %s31
      %p86 = scmp.eq.s32.totalorder %s85, 0
      %s88 = sadd.s32 %s87, 1
      %s89 = scalar_select %p86, %s87, %s88
      %p92 = pneg %p86
      %p93 = scmp.eq.s32.totalorder %s16, 1
      %p94 = por %p92, %p93
      %p95 = scmp.ne.s32.totalorder %s87, %s90
      %p96 = scmp.eq.s32.totalorder %s16, 0
      %p97 = por %p95, %p96
      %p98 = scmp.ne.s32.totalorder %s87, %s90
      %p99 = scmp.eq.s32.totalorder %s21, 1
      %p100 = por %p98, %p99
      %p101 = scmp.ne.s32.totalorder %s90, %s91
      %p102 = scmp.eq.s32.totalorder %s21, 0
      %p103 = por %p101, %p102
      %p104 = scmp.ne.s32.totalorder %s90, %s91
      %p105 = scmp.eq.s32.totalorder %s22, 1
      %p106 = por %p104, %p105
      %p108 = scmp.ne.s32.totalorder %s91, %s107
      %p109 = scmp.eq.s32.totalorder %s22, 0
      %p110 = por %p108, %p109
      %s111 = ssub.s32 %s24, %s31
      %p112 = scmp.eq.s32.totalorder %s111, 0
      %s114 = sadd.s32 %s113, 1
      %s115 = scalar_select %p112, %s113, %s114
      %p118 = pneg %p112
      %p119 = scmp.eq.s32.totalorder %s16, 1
      %p120 = por %p118, %p119
      %p121 = scmp.ne.s32.totalorder %s113, %s116
      %p122 = scmp.eq.s32.totalorder %s16, 0
      %p123 = por %p121, %p122
      %p124 = scmp.ne.s32.totalorder %s113, %s116
      %p125 = scmp.eq.s32.totalorder %s21, 1
      %p126 = por %p124, %p125
      %p127 = scmp.ne.s32.totalorder %s116, %s117
      %p128 = scmp.eq.s32.totalorder %s21, 0
      %p129 = por %p127, %p128
      %p130 = scmp.ne.s32.totalorder %s116, %s117
      %p131 = scmp.eq.s32.totalorder %s22, 1
      %p132 = por %p130, %p131
      %p134 = scmp.ne.s32.totalorder %s117, %s133
      %p135 = scmp.eq.s32.totalorder %s22, 0
      %p136 = por %p134, %p135
      %s137 = ssub.s32 %s23, %s35
      %s138 = ssub.s32 %s24, %s31
      %s139 = sor.u32 %s137, %s138
      %p140 = scmp.eq.s32.totalorder %s139, 0
      %s142 = sadd.s32 %s141, 1
      %s143 = scalar_select %p140, %s141, %s142
      %p146 = pneg %p140
      %p147 = scmp.eq.s32.totalorder %s16, 1
      %p148 = por %p146, %p147
      %p149 = scmp.ne.s32.totalorder %s141, %s144
      %p150 = scmp.eq.s32.totalorder %s16, 0
      %p151 = por %p149, %p150
      %p152 = scmp.ne.s32.totalorder %s141, %s144
      %p153 = scmp.eq.s32.totalorder %s21, 1
      %p154 = por %p152, %p153
      %p155 = scmp.ne.s32.totalorder %s144, %s145
      %p156 = scmp.eq.s32.totalorder %s21, 0
      %p157 = por %p155, %p156
      %p158 = scmp.ne.s32.totalorder %s144, %s145
      %p159 = scmp.eq.s32.totalorder %s22, 1
      %p160 = por %p158, %p159
      %p162 = scmp.ne.s32.totalorder %s145, %s161
      %p163 = scmp.eq.s32.totalorder %s22, 0
      %p164 = por %p162, %p163
      %p165 = scmp.le.s32.totalorder 1, %s16
      %p166 = scmp.lt.s32.totalorder %s16, 3
      %p167 = pnand %p165, %p166
      %p168 = pneg %p167
      // Predicated region
      $region9: #{tpu_custom_call.1} parent=5 // pred_check
        _
      $region10: #{tpu_custom_call.1} parent=5 // pred_check_branch
        %170 = sbr.rel (%p167) target = $region12
      $region11: #{tpu_custom_call.1} parent=5 // pred_region
        %s171 = ssub.s32 %s16, 1
        // Predicated region
        $region13: #{tpu_custom_call.1} parent=11 // pred_check
          %p172 = pneg %p77
        $region14: #{tpu_custom_call.1} parent=11 // pred_check_branch
          %174 = sbr.rel (%p172) target = $region16
        $region15: #{tpu_custom_call.1} parent=11 // pred_region
          _
        $region16: #{tpu_custom_call.1} parent=11 // pred_fallthru
          _
        // Predicated region
        $region17: #{tpu_custom_call.1} parent=11 // pred_check
          %p175 = pneg %p103
        $region18: #{tpu_custom_call.1} parent=11 // pred_check_branch
          %177 = sbr.rel (%p175) target = $region20
        $region19: #{tpu_custom_call.1} parent=11 // pred_region
          %p178 = scmp.lt.s32.totalorder %s26, 0
          %s179 = scalar_select %p178, %s26, 0
          %s180 = smul.addr %s179, 2
          %s181 = smul.addr %s180, 8
          %s182 = scalar_lea.vmem %s2, %s181
        $region20: #{tpu_custom_call.1} parent=11 // pred_fallthru
          _
        // Predicated region
        $region21: #{tpu_custom_call.1} parent=11 // pred_check
          %p183 = pneg %p129
        $region22: #{tpu_custom_call.1} parent=11 // pred_check_branch
          %185 = sbr.rel (%p183) target = $region24
        $region23: #{tpu_custom_call.1} parent=11 // pred_region
          %p186 = scmp.lt.s32.totalorder %s26, 0
          %s187 = scalar_select %p186, %s26, 0
          %s188 = smul.addr %s187, 2
          %s189 = smul.addr %s188, 8
          %s190 = scalar_lea.vmem %s3, %s189
        $region24: #{tpu_custom_call.1} parent=11 // pred_fallthru
          _
      $region12: #{tpu_custom_call.1} parent=5 // pred_fallthru
        _
      %p191 = scmp.lt.s32.totalorder %s16, 2
      // Predicated region
      $region25: #{tpu_custom_call.1} parent=5 // pred_check
        %p192 = pneg %p191
      $region26: #{tpu_custom_call.1} parent=5 // pred_check_branch
        %194 = sbr.rel (%p192) target = $region28
      $region27: #{tpu_custom_call.1} parent=5 // pred_region
        // Predicated region
        $region29: #{tpu_custom_call.1} parent=27 // pred_check
          %p195 = pneg %p50
        $region30: #{tpu_custom_call.1} parent=27 // pred_check_branch
          %197 = sbr.rel (%p195) target = $region32
        $region31: #{tpu_custom_call.1} parent=27 // pred_region
          %s198 = sand.u32 %s40, 1
          %s199 = scalar_lea.sflag [#allocation3], %s198
          %s200 = sand.u32 %s40, 1
          %s201 = smul.addr %s200, 64
          %s202 = scalar_lea.vmem [#allocation2], %s201
          %s203 = smul.u32 2, %s24
          %s205 = ssub.s32 1024, 1024
          %206 = vsyncadd %s199, %s205
          %s207 = smul.addr %s23, 8
          %s208 = sadd.s32 %s203, %s207
          %s209 = smul.addr %s208, 128
          %s210 = scalar_lea.hbm %s0, %s209
          %s211 = sshll.u32 %s202, 4
          %s212 = int_to_ptr.vmem [resolvable:$true] %s211
          %217 = dma.hbm_to_vmem [thread:$0]  %s210, 1024, %s212, %s199, 128, 128, 8
        $region32: #{tpu_custom_call.1} parent=27 // pred_fallthru
          _
      $region28: #{tpu_custom_call.1} parent=5 // pred_fallthru
        _
      %p218 = scmp.le.s32.totalorder 1, %s16
      %p219 = scmp.lt.s32.totalorder %s16, 3
      %p220 = pnand %p218, %p219
      %p221 = pneg %p220
      // Predicated region
      $region33: #{tpu_custom_call.1} parent=5 // pred_check
        _
      $region34: #{tpu_custom_call.1} parent=5 // pred_check_branch
        %223 = sbr.rel (%p220) target = $region36
      $region35: #{tpu_custom_call.1} parent=5 // pred_region
        %s224 = ssub.s32 %s16, 1
        %s225 = sand.u32 %s43, 1
        %s226 = scalar_lea.sflag [#allocation3], %s225
        %s227 = sand.u32 %s43, 1
        %s228 = smul.addr %s227, 64
        %s229 = scalar_lea.vmem [#allocation2], %s228
        // Predicated region
        $region37: #{tpu_custom_call.1} parent=35 // pred_check
          %p230 = pneg %p56
        $region38: #{tpu_custom_call.1} parent=35 // pred_check_branch
          %232 = sbr.rel (%p230) target = $region40
        $region39: #{tpu_custom_call.1} parent=35 // pred_region
          %233 = dma.done %s226, 1024
        $region40: #{tpu_custom_call.1} parent=35 // pred_fallthru
          _
        %s234 = sand.u32 %s43, 1
        %s235 = scalar_lea.sflag [#allocation3], %s234
        %s236 = sand.u32 %s43, 1
        %s237 = smul.addr %s236, 64
        %s238 = scalar_lea.vmem [#allocation2], %s237
        %p239 = pneg %p56
        %p240 = pneg %p53
        %p241 = pneg %p77
        %p242 = pneg %p74
        %p243 = scmp.lt.s32.totalorder %s26, 0
        %s244 = scalar_select %p243, %s26, 0
        %s245 = smul.addr %s244, 2
        %s246 = smul.addr %s245, 8
        %s247 = scalar_lea.vmem %s2, %s246
        %p248 = pneg %p103
        %p249 = pneg %p100
        %p250 = scmp.lt.s32.totalorder %s26, 0
        %s251 = scalar_select %p250, %s26, 0
        %s252 = smul.addr %s251, 2
        %s253 = smul.addr %s252, 8
        %s254 = scalar_lea.vmem %s3, %s253
        %p255 = pneg %p129
        %p256 = pneg %p126
        %p257 = pneg %p157
        %p258 = pneg %p154
        %s259 = sand.u32 %s144, 1
        %s260 = scalar_lea.sflag [#allocation4], %s259
        %s261 = sand.u32 %s144, 1
        %s262 = smul.addr %s261, 32
        %s263 = scalar_lea.vmem [#allocation5], %s262
        %s264 = smul.u32 2, %s26
        %p265 = scmp.lt.s32.totalorder %s26, 0
        %s266 = scalar_select %p265, %s26, 0
        %s267 = smul.addr %s266, 2
        %s268 = smul.addr %s267, 8
        %s269 = scalar_lea.vmem %s2, %s268
        %p270 = scmp.lt.s32.totalorder %s26, 0
        %s271 = scalar_select %p270, %s26, 0
        %s272 = smul.addr %s271, 2
        %s273 = smul.addr %s272, 8
        %s274 = scalar_lea.vmem %s3, %s273
        %v275 = vld [vmem:[%s229] sm:$0xff]
        %v276 = vld [vmem:[%s229 + $0x8] sm:$0xff]
        %v277 = vld [vmem:[%s229 + $0x10] sm:$0xff]
        %v278 = vld [vmem:[%s229 + $0x18] sm:$0xff]
        %v279 = vld [vmem:[%s229 + $0x20] sm:$0xff]
        %v280 = vld [vmem:[%s229 + $0x28] sm:$0xff]
        %v281 = vld [vmem:[%s229 + $0x30] sm:$0xff]
        %v282 = vld [vmem:[%s229 + $0x38] sm:$0xff]
        %v283 = vld [vmem:[%s1] sm:$0xff]
        %v284 = vld [vmem:[%s1 + $0x8] sm:$0xff]
        %vm285 = vcmask 130048
        %v287 = vsel %vm285, %v275, 0
        %v290 = vsel %vm285, %v276, 0
        %v293 = vsel %vm285, %v277, 0
        %v296 = vsel %vm285, %v278, 0
        %v299 = vsel %vm285, %v279, 0
        %v302 = vsel %vm285, %v280, 0
        %v305 = vsel %vm285, %v281, 0
        %v308 = vsel %vm285, %v282, 0
        %310 = vmatprep.subr.mxu0 0.0
        %311 = vmatpush1.msra.mxu0 %v283
        %312 = vmatprep.subr.mxu0 0.0
        %313 = vmatpush1.msra.mxu0 %v284
        %314 = vmatprep.subr.mxu0 0.0
        %315 = vmatpush1.msra.mxu0 0.0
        %316 = vmatprep.subr.mxu0 0.0
        %317 = vmatpush1.msra.mxu0 0.0
        %318 = vmatprep.subr.mxu0 0.0
        %319 = vmatpush1.msra.mxu0 0.0
        %320 = vmatprep.subr.mxu0 0.0
        %321 = vmatpush1.msra.mxu0 0.0
        %322 = vmatprep.subr.mxu0 0.0
        %323 = vmatpush1.msra.mxu0 0.0
        %324 = vmatprep.subr.mxu0 0.0
        %325 = vmatpush1.msra.mxu0 0.0
        %326 = vmatprep.subr.mxu0 0.0
        %327 = vmatpush1.msra.mxu0 0.0
        %328 = vmatprep.subr.mxu0 0.0
        %329 = vmatpush1.msra.mxu0 0.0
        %330 = vmatprep.subr.mxu0 0.0
        %331 = vmatpush1.msra.mxu0 0.0
        %332 = vmatprep.subr.mxu0 0.0
        %333 = vmatpush1.msra.mxu0 0.0
        %334 = vmatprep.subr.mxu0 0.0
        %335 = vmatpush1.msra.mxu0 0.0
        %336 = vmatprep.subr.mxu0 0.0
        %337 = vmatpush1.msra.mxu0 0.0
        %338 = vmatprep.subr.mxu0 0.0
        %339 = vmatpush1.msra.mxu0 0.0
        %340 = vmatprep.subr.mxu0 0.0
        %341 = vmatpush1.msra.mxu0 0.0
        %342 = vmatprep.subr.mxu0 0.0
        %343 = vmatpush1.msra.mxu0 0.0
        %344 = vmatprep.subr.mxu0 0.0
        %345 = vmatpush1.msra.mxu0 0.0
        %346 = vmatprep.subr.mxu0 0.0
        %347 = vmatpush1.msra.mxu0 0.0
        %348 = vmatprep.subr.mxu0 0.0
        %349 = vmatpush1.msra.mxu0 0.0
        %350 = vmatprep.subr.mxu0 0.0
        %351 = vmatpush1.msra.mxu0 0.0
        %352 = vmatprep.subr.mxu0 0.0
        %353 = vmatpush1.msra.mxu0 0.0
        %354 = vmatprep.subr.mxu0 0.0
        %355 = vmatpush1.msra.mxu0 0.0
        %356 = vmatprep.subr.mxu0 0.0
        %357 = vmatpush1.msra.mxu0 0.0
        %358 = vmatprep.subr.mxu0 0.0
        %359 = vmatpush1.msra.mxu0 0.0
        %360 = vmatprep.subr.mxu0 0.0
        %361 = vmatpush1.msra.mxu0 0.0
        %362 = vmatprep.subr.mxu0 0.0
        %363 = vmatpush1.msra.mxu0 0.0
        %364 = vmatprep.subr.mxu0 0.0
        %365 = vmatpush1.msra.mxu0 0.0
        %366 = vmatprep.subr.mxu0 0.0
        %367 = vmatpush1.msra.mxu0 0.0
        %368 = vmatprep.subr.mxu0 0.0
        %369 = vmatpush1.msra.mxu0 0.0
        %370 = vmatprep.subr.mxu0 0.0
        %371 = vmatpush1.msra.mxu0 0.0
        %372 = vmatprep.subr.mxu0 0.0
        %373 = vmatpush1.msra.mxu0 0.0
        %374 = vmatprep.mubr.f32.mxu0 0.0
        %375 = vmatmul.mubr.f32.gmra.mrb[0].mxu0 %v287
        %v376 = vpop.f32.mrb[0].mxu0
        %v377 = vadd.f32 0.0, %v376
        %v378 = vpop.f32.mrb[0].mxu0
        %379 = vmatprep.mubr.f32.mxu0 0.0
        %380 = vmatmul.mubr.f32.gmra.mrb[0].mxu0 %v290
        %v381 = vpop.f32.mrb[0].mxu0
        %v382 = vadd.f32 0.0, %v381
        %v383 = vpop.f32.mrb[0].mxu0
        %384 = vmatprep.mubr.f32.mxu0 0.0
        %385 = vmatmul.mubr.f32.gmra.mrb[0].mxu0 %v293
        %v386 = vpop.f32.mrb[0].mxu0
        %v387 = vadd.f32 0.0, %v386
        %v388 = vpop.f32.mrb[0].mxu0
        %389 = vmatprep.mubr.f32.mxu0 0.0
        %390 = vmatmul.mubr.f32.gmra.mrb[0].mxu0 %v296
        %v391 = vpop.f32.mrb[0].mxu0
        %v392 = vadd.f32 0.0, %v391
        %v393 = vpop.f32.mrb[0].mxu0
        %394 = vmatprep.mubr.f32.mxu0 0.0
        %395 = vmatmul.mubr.f32.gmra.mrb[0].mxu0 %v299
        %v396 = vpop.f32.mrb[0].mxu0
        %v397 = vadd.f32 0.0, %v396
        %v398 = vpop.f32.mrb[0].mxu0
        %399 = vmatprep.mubr.f32.mxu0 0.0
        %400 = vmatmul.mubr.f32.gmra.mrb[0].mxu0 %v302
        %v401 = vpop.f32.mrb[0].mxu0
        %v402 = vadd.f32 0.0, %v401
        %v403 = vpop.f32.mrb[0].mxu0
        %404 = vmatprep.mubr.f32.mxu0 0.0
        %405 = vmatmul.mubr.f32.gmra.mrb[0].mxu0 %v305
        %v406 = vpop.f32.mrb[0].mxu0
        %v407 = vadd.f32 0.0, %v406
        %v408 = vpop.f32.mrb[0].mxu0
        %409 = vmatprep.mubr.f32.mxu0 0.0
        %410 = vmatmul.mubr.f32.gmra.mrb[0].mxu0 %v308
        %v411 = vpop.f32.mrb[0].mxu0
        %v412 = vadd.f32 0.0, %v411
        %v413 = vpop.f32.mrb[0].mxu0
        %414 = vdwg.mxu0
        %415 = vxpose.xlu0.b32.start [1/16] %v377, 128
        %416 = vxpose.xlu0.b32.cont [2/16] %v382, 128
        %417 = vxpose.xlu0.b32.cont [3/16] 0.0, 128
        %418 = vxpose.xlu0.b32.cont [4/16] 0.0, 128
        %419 = vxpose.xlu0.b32.cont [5/16] 0.0, 128
        %420 = vxpose.xlu0.b32.cont [6/16] 0.0, 128
        %421 = vxpose.xlu0.b32.cont [7/16] 0.0, 128
        %422 = vxpose.xlu0.b32.cont [8/16] 0.0, 128
        %423 = vxpose.xlu0.b32.cont [9/16] 0.0, 128
        %424 = vxpose.xlu0.b32.cont [10/16] 0.0, 128
        %425 = vxpose.xlu0.b32.cont [11/16] 0.0, 128
        %426 = vxpose.xlu0.b32.cont [12/16] 0.0, 128
        %427 = vxpose.xlu0.b32.cont [13/16] 0.0, 128
        %428 = vxpose.xlu0.b32.cont [14/16] 0.0, 128
        %429 = vxpose.xlu0.b32.cont [15/16] 0.0, 128
        %430 = vxpose.xlu0.b32.end [16/16] 0.0, 128
        %v431 = vpop.trf.xlu0
        %v432 = vpop.trf.xlu0
        %v433 = vpop.trf.xlu0
        %v434 = vpop.trf.xlu0
        %v435 = vpop.trf.xlu0
        %v436 = vpop.trf.xlu0
        %v437 = vpop.trf.xlu0
        %v438 = vpop.trf.xlu0
        %v439 = vpop.trf.xlu0
        %v440 = vpop.trf.xlu0
        %v441 = vpop.trf.xlu0
        %v442 = vpop.trf.xlu0
        %v443 = vpop.trf.xlu0
        %v444 = vpop.trf.xlu0
        %v445 = vpop.trf.xlu0
        %v446 = vpop.trf.xlu0
        %447 = vxpose.xlu0.b32.start [1/16] %v387, 128
        %448 = vxpose.xlu0.b32.cont [2/16] %v392, 128
        %449 = vxpose.xlu0.b32.cont [3/16] 0.0, 128
        %450 = vxpose.xlu0.b32.cont [4/16] 0.0, 128
        %451 = vxpose.xlu0.b32.cont [5/16] 0.0, 128
        %452 = vxpose.xlu0.b32.cont [6/16] 0.0, 128
        %453 = vxpose.xlu0.b32.cont [7/16] 0.0, 128
        %454 = vxpose.xlu0.b32.cont [8/16] 0.0, 128
        %455 = vxpose.xlu0.b32.cont [9/16] 0.0, 128
        %456 = vxpose.xlu0.b32.cont [10/16] 0.0, 128
        %457 = vxpose.xlu0.b32.cont [11/16] 0.0, 128
        %458 = vxpose.xlu0.b32.cont [12/16] 0.0, 128
        %459 = vxpose.xlu0.b32.cont [13/16] 0.0, 128
        %460 = vxpose.xlu0.b32.cont [14/16] 0.0, 128
        %461 = vxpose.xlu0.b32.cont [15/16] 0.0, 128
        %462 = vxpose.xlu0.b32.end [16/16] 0.0, 128
        %v463 = vpop.trf.xlu0
        %v464 = vpop.trf.xlu0
        %v465 = vpop.trf.xlu0
        %v466 = vpop.trf.xlu0
        %v467 = vpop.trf.xlu0
        %v468 = vpop.trf.xlu0
        %v469 = vpop.trf.xlu0
        %v470 = vpop.trf.xlu0
        %v471 = vpop.trf.xlu0
        %v472 = vpop.trf.xlu0
        %v473 = vpop.trf.xlu0
        %v474 = vpop.trf.xlu0
        %v475 = vpop.trf.xlu0
        %v476 = vpop.trf.xlu0
        %v477 = vpop.trf.xlu0
        %v478 = vpop.trf.xlu0
        %479 = vxpose.xlu0.b32.start [1/16] %v397, 128
        %480 = vxpose.xlu0.b32.cont [2/16] %v402, 128
        %481 = vxpose.xlu0.b32.cont [3/16] 0.0, 128
        %482 = vxpose.xlu0.b32.cont [4/16] 0.0, 128
        %483 = vxpose.xlu0.b32.cont [5/16] 0.0, 128
        %484 = vxpose.xlu0.b32.cont [6/16] 0.0, 128
        %485 = vxpose.xlu0.b32.cont [7/16] 0.0, 128
        %486 = vxpose.xlu0.b32.cont [8/16] 0.0, 128
        %487 = vxpose.xlu0.b32.cont [9/16] 0.0, 128
        %488 = vxpose.xlu0.b32.cont [10/16] 0.0, 128
        %489 = vxpose.xlu0.b32.cont [11/16] 0.0, 128
        %490 = vxpose.xlu0.b32.cont [12/16] 0.0, 128
        %491 = vxpose.xlu0.b32.cont [13/16] 0.0, 128
        %492 = vxpose.xlu0.b32.cont [14/16] 0.0, 128
        %493 = vxpose.xlu0.b32.cont [15/16] 0.0, 128
        %494 = vxpose.xlu0.b32.end [16/16] 0.0, 128
        %v495 = vpop.trf.xlu0
        %v496 = vpop.trf.xlu0
        %v497 = vpop.trf.xlu0
        %v498 = vpop.trf.xlu0
        %v499 = vpop.trf.xlu0
        %v500 = vpop.trf.xlu0
        %v501 = vpop.trf.xlu0
        %v502 = vpop.trf.xlu0
        %v503 = vpop.trf.xlu0
        %v504 = vpop.trf.xlu0
        %v505 = vpop.trf.xlu0
        %v506 = vpop.trf.xlu0
        %v507 = vpop.trf.xlu0
        %v508 = vpop.trf.xlu0
        %v509 = vpop.trf.xlu0
        %v510 = vpop.trf.xlu0
        %511 = vxpose.xlu0.b32.start [1/16] %v407, 128
        %512 = vxpose.xlu0.b32.cont [2/16] %v412, 128
        %513 = vxpose.xlu0.b32.cont [3/16] 0.0, 128
        %514 = vxpose.xlu0.b32.cont [4/16] 0.0, 128
        %515 = vxpose.xlu0.b32.cont [5/16] 0.0, 128
        %516 = vxpose.xlu0.b32.cont [6/16] 0.0, 128
        %517 = vxpose.xlu0.b32.cont [7/16] 0.0, 128
        %518 = vxpose.xlu0.b32.cont [8/16] 0.0, 128
        %519 = vxpose.xlu0.b32.cont [9/16] 0.0, 128
        %520 = vxpose.xlu0.b32.cont [10/16] 0.0, 128
        %521 = vxpose.xlu0.b32.cont [11/16] 0.0, 128
        %522 = vxpose.xlu0.b32.cont [12/16] 0.0, 128
        %523 = vxpose.xlu0.b32.cont [13/16] 0.0, 128
        %524 = vxpose.xlu0.b32.cont [14/16] 0.0, 128
        %525 = vxpose.xlu0.b32.cont [15/16] 0.0, 128
        %526 = vxpose.xlu0.b32.end [16/16] 0.0, 128
        %v527 = vpop.trf.xlu0
        %v528 = vpop.trf.xlu0
        %v529 = vpop.trf.xlu0
        %v530 = vpop.trf.xlu0
        %v531 = vpop.trf.xlu0
        %v532 = vpop.trf.xlu0
        %v533 = vpop.trf.xlu0
        %v534 = vpop.trf.xlu0
        %v535 = vpop.trf.xlu0
        %v536 = vpop.trf.xlu0
        %v537 = vpop.trf.xlu0
        %v538 = vpop.trf.xlu0
        %v539 = vpop.trf.xlu0
        %v540 = vpop.trf.xlu0
        %v541 = vpop.trf.xlu0
        %v542 = vpop.trf.xlu0
        %v543 = vld [vmem:[%s269] sm:$0xff]
        %v544 = vld [vmem:[%s269 + $0x8] sm:$0xff]
        %v545 = vld [vmem:[%s274] sm:$0xff]
        %v546 = vld [vmem:[%s274 + $0x8] sm:$0xff]
        %v548 = vsel %vm285, %v431, 0
        %v551 = vsel %vm285, %v463, 0
        %v554 = vsel %vm285, %v495, 0
        %v557 = vsel %vm285, %v527, 0
        %559 = vmatprep.subr.mxu0 0.0
        %560 = vmatpush1.msra.mxu0 %v543
        %561 = vmatprep.subr.mxu0 0.0
        %562 = vmatpush1.msra.mxu0 %v544
        %563 = vmatprep.subr.mxu0 0.0
        %564 = vmatpush1.msra.mxu0 0.0
        %565 = vmatprep.subr.mxu0 0.0
        %566 = vmatpush1.msra.mxu0 0.0
        %567 = vmatprep.subr.mxu0 0.0
        %568 = vmatpush1.msra.mxu0 0.0
        %569 = vmatprep.subr.mxu0 0.0
        %570 = vmatpush1.msra.mxu0 0.0
        %571 = vmatprep.subr.mxu0 0.0
        %572 = vmatpush1.msra.mxu0 0.0
        %573 = vmatprep.subr.mxu0 0.0
        %574 = vmatpush1.msra.mxu0 0.0
        %575 = vmatprep.subr.mxu0 0.0
        %576 = vmatpush1.msra.mxu0 0.0
        %577 = vmatprep.subr.mxu0 0.0
        %578 = vmatpush1.msra.mxu0 0.0
        %579 = vmatprep.subr.mxu0 0.0
        %580 = vmatpush1.msra.mxu0 0.0
        %581 = vmatprep.subr.mxu0 0.0
        %582 = vmatpush1.msra.mxu0 0.0
        %583 = vmatprep.subr.mxu0 0.0
        %584 = vmatpush1.msra.mxu0 0.0
        %585 = vmatprep.subr.mxu0 0.0
        %586 = vmatpush1.msra.mxu0 0.0
        %587 = vmatprep.subr.mxu0 0.0
        %588 = vmatpush1.msra.mxu0 0.0
        %589 = vmatprep.subr.mxu0 0.0
        %590 = vmatpush1.msra.mxu0 0.0
        %591 = vmatprep.subr.mxu0 0.0
        %592 = vmatpush1.msra.mxu0 0.0
        %593 = vmatprep.subr.mxu0 0.0
        %594 = vmatpush1.msra.mxu0 0.0
        %595 = vmatprep.subr.mxu0 0.0
        %596 = vmatpush1.msra.mxu0 0.0
        %597 = vmatprep.subr.mxu0 0.0
        %598 = vmatpush1.msra.mxu0 0.0
        %599 = vmatprep.subr.mxu0 0.0
        %600 = vmatpush1.msra.mxu0 0.0
        %601 = vmatprep.subr.mxu0 0.0
        %602 = vmatpush1.msra.mxu0 0.0
        %603 = vmatprep.subr.mxu0 0.0
        %604 = vmatpush1.msra.mxu0 0.0
        %605 = vmatprep.subr.mxu0 0.0
        %606 = vmatpush1.msra.mxu0 0.0
        %607 = vmatprep.subr.mxu0 0.0
        %608 = vmatpush1.msra.mxu0 0.0
        %609 = vmatprep.subr.mxu0 0.0
        %610 = vmatpush1.msra.mxu0 0.0
        %611 = vmatprep.subr.mxu0 0.0
        %612 = vmatpush1.msra.mxu0 0.0
        %613 = vmatprep.subr.mxu0 0.0
        %614 = vmatpush1.msra.mxu0 0.0
        %615 = vmatprep.subr.mxu0 0.0
        %616 = vmatpush1.msra.mxu0 0.0
        %617 = vmatprep.subr.mxu0 0.0
        %618 = vmatpush1.msra.mxu0 0.0
        %619 = vmatprep.subr.mxu0 0.0
        %620 = vmatpush1.msra.mxu0 0.0
        %621 = vmatprep.subr.mxu0 0.0
        %622 = vmatpush1.msra.mxu0 0.0
        %623 = vmatprep.mubr.f32.mxu0 0.0
        %624 = vmatmul.mubr.f32.gmra.mrb[0].mxu0 %v548
        %v625 = vpop.f32.mrb[0].mxu0
        %v626 = vadd.f32 0.0, %v625
        %v627 = vpop.f32.mrb[0].mxu0
        %628 = vmatprep.mubr.f32.mxu0 0.0
        %629 = vmatmul.mubr.f32.gmra.mrb[0].mxu0 %v551
        %v630 = vpop.f32.mrb[0].mxu0
        %v631 = vadd.f32 0.0, %v630
        %v632 = vpop.f32.mrb[0].mxu0
        %633 = vmatprep.mubr.f32.mxu0 0.0
        %634 = vmatmul.mubr.f32.gmra.mrb[0].mxu0 %v554
        %v635 = vpop.f32.mrb[0].mxu0
        %v636 = vadd.f32 0.0, %v635
        %v637 = vpop.f32.mrb[0].mxu0
        %638 = vmatprep.mubr.f32.mxu0 0.0
        %639 = vmatmul.mubr.f32.gmra.mrb[0].mxu0 %v557
        %v640 = vpop.f32.mrb[0].mxu0
        %v641 = vadd.f32 0.0, %v640
        %v642 = vpop.f32.mrb[0].mxu0
        %643 = vdwg.mxu0
        %644 = vmatprep.subr.mxu0 0.0
        %645 = vmatpush1.msra.mxu0 %v545
        %646 = vmatprep.subr.mxu0 0.0
        %647 = vmatpush1.msra.mxu0 %v546
        %648 = vmatprep.subr.mxu0 0.0
        %649 = vmatpush1.msra.mxu0 0.0
        %650 = vmatprep.subr.mxu0 0.0
        %651 = vmatpush1.msra.mxu0 0.0
        %652 = vmatprep.subr.mxu0 0.0
        %653 = vmatpush1.msra.mxu0 0.0
        %654 = vmatprep.subr.mxu0 0.0
        %655 = vmatpush1.msra.mxu0 0.0
        %656 = vmatprep.subr.mxu0 0.0
        %657 = vmatpush1.msra.mxu0 0.0
        %658 = vmatprep.subr.mxu0 0.0
        %659 = vmatpush1.msra.mxu0 0.0
        %660 = vmatprep.subr.mxu0 0.0
        %661 = vmatpush1.msra.mxu0 0.0
        %662 = vmatprep.subr.mxu0 0.0
        %663 = vmatpush1.msra.mxu0 0.0
        %664 = vmatprep.subr.mxu0 0.0
        %665 = vmatpush1.msra.mxu0 0.0
        %666 = vmatprep.subr.mxu0 0.0
        %667 = vmatpush1.msra.mxu0 0.0
        %668 = vmatprep.subr.mxu0 0.0
        %669 = vmatpush1.msra.mxu0 0.0
        %670 = vmatprep.subr.mxu0 0.0
        %671 = vmatpush1.msra.mxu0 0.0
        %672 = vmatprep.subr.mxu0 0.0
        %673 = vmatpush1.msra.mxu0 0.0
        %674 = vmatprep.subr.mxu0 0.0
        %675 = vmatpush1.msra.mxu0 0.0
        %676 = vmatprep.subr.mxu0 0.0
        %677 = vmatpush1.msra.mxu0 0.0
        %678 = vmatprep.subr.mxu0 0.0
        %679 = vmatpush1.msra.mxu0 0.0
        %680 = vmatprep.subr.mxu0 0.0
        %681 = vmatpush1.msra.mxu0 0.0
        %682 = vmatprep.subr.mxu0 0.0
        %683 = vmatpush1.msra.mxu0 0.0
        %684 = vmatprep.subr.mxu0 0.0
        %685 = vmatpush1.msra.mxu0 0.0
        %686 = vmatprep.subr.mxu0 0.0
        %687 = vmatpush1.msra.mxu0 0.0
        %688 = vmatprep.subr.mxu0 0.0
        %689 = vmatpush1.msra.mxu0 0.0
        %690 = vmatprep.subr.mxu0 0.0
        %691 = vmatpush1.msra.mxu0 0.0
        %692 = vmatprep.subr.mxu0 0.0
        %693 = vmatpush1.msra.mxu0 0.0
        %694 = vmatprep.subr.mxu0 0.0
        %695 = vmatpush1.msra.mxu0 0.0
        %696 = vmatprep.subr.mxu0 0.0
        %697 = vmatpush1.msra.mxu0 0.0
        %698 = vmatprep.subr.mxu0 0.0
        %699 = vmatpush1.msra.mxu0 0.0
        %700 = vmatprep.subr.mxu0 0.0
        %701 = vmatpush1.msra.mxu0 0.0
        %702 = vmatprep.subr.mxu0 0.0
        %703 = vmatpush1.msra.mxu0 0.0
        %704 = vmatprep.subr.mxu0 0.0
        %705 = vmatpush1.msra.mxu0 0.0
        %706 = vmatprep.subr.mxu0 0.0
        %707 = vmatpush1.msra.mxu0 0.0
        %708 = vmatprep.mubr.f32.mxu0 0.0
        %709 = vmatmul.mubr.f32.gmra.mrb[0].mxu0 %v548
        %v710 = vpop.f32.mrb[0].mxu0
        %v711 = vadd.f32 0.0, %v710
        %v712 = vpop.f32.mrb[0].mxu0
        %713 = vmatprep.mubr.f32.mxu0 0.0
        %714 = vmatmul.mubr.f32.gmra.mrb[0].mxu0 %v551
        %v715 = vpop.f32.mrb[0].mxu0
        %v716 = vadd.f32 0.0, %v715
        %v717 = vpop.f32.mrb[0].mxu0
        %718 = vmatprep.mubr.f32.mxu0 0.0
        %719 = vmatmul.mubr.f32.gmra.mrb[0].mxu0 %v554
        %v720 = vpop.f32.mrb[0].mxu0
        %v721 = vadd.f32 0.0, %v720
        %v722 = vpop.f32.mrb[0].mxu0
        %723 = vmatprep.mubr.f32.mxu0 0.0
        %724 = vmatmul.mubr.f32.gmra.mrb[0].mxu0 %v557
        %v725 = vpop.f32.mrb[0].mxu0
        %v726 = vadd.f32 0.0, %v725
        %v727 = vpop.f32.mrb[0].mxu0
        %728 = vdwg.mxu0
        %v730 = vsel %vm285, %v432, 0
        %v733 = vsel %vm285, %v464, 0
        %v736 = vsel %vm285, %v496, 0
        %v739 = vsel %vm285, %v528, 0
        %741 = vmatprep.subr.mxu0 0.0
        %742 = vmatpush1.msra.mxu0 %v543
        %743 = vmatprep.subr.mxu0 0.0
        %744 = vmatpush1.msra.mxu0 %v544
        %745 = vmatprep.subr.mxu0 0.0
        %746 = vmatpush1.msra.mxu0 0.0
        %747 = vmatprep.subr.mxu0 0.0
        %748 = vmatpush1.msra.mxu0 0.0
        %749 = vmatprep.subr.mxu0 0.0
        %750 = vmatpush1.msra.mxu0 0.0
        %751 = vmatprep.subr.mxu0 0.0
        %752 = vmatpush1.msra.mxu0 0.0
        %753 = vmatprep.subr.mxu0 0.0
        %754 = vmatpush1.msra.mxu0 0.0
        %755 = vmatprep.subr.mxu0 0.0
        %756 = vmatpush1.msra.mxu0 0.0
        %757 = vmatprep.subr.mxu0 0.0
        %758 = vmatpush1.msra.mxu0 0.0
        %759 = vmatprep.subr.mxu0 0.0
        %760 = vmatpush1.msra.mxu0 0.0
        %761 = vmatprep.subr.mxu0 0.0
        %762 = vmatpush1.msra.mxu0 0.0
        %763 = vmatprep.subr.mxu0 0.0
        %764 = vmatpush1.msra.mxu0 0.0
        %765 = vmatprep.subr.mxu0 0.0
        %766 = vmatpush1.msra.mxu0 0.0
        %767 = vmatprep.subr.mxu0 0.0
        %768 = vmatpush1.msra.mxu0 0.0
        %769 = vmatprep.subr.mxu0 0.0
        %770 = vmatpush1.msra.mxu0 0.0
        %771 = vmatprep.subr.mxu0 0.0
        %772 = vmatpush1.msra.mxu0 0.0
        %773 = vmatprep.subr.mxu0 0.0
        %774 = vmatpush1.msra.mxu0 0.0
        %775 = vmatprep.subr.mxu0 0.0
        %776 = vmatpush1.msra.mxu0 0.0
        %777 = vmatprep.subr.mxu0 0.0
        %778 = vmatpush1.msra.mxu0 0.0
        %779 = vmatprep.subr.mxu0 0.0
        %780 = vmatpush1.msra.mxu0 0.0
        %781 = vmatprep.subr.mxu0 0.0
        %782 = vmatpush1.msra.mxu0 0.0
        %783 = vmatprep.subr.mxu0 0.0
        %784 = vmatpush1.msra.mxu0 0.0
        %785 = vmatprep.subr.mxu0 0.0
        %786 = vmatpush1.msra.mxu0 0.0
        %787 = vmatprep.subr.mxu0 0.0
        %788 = vmatpush1.msra.mxu0 0.0
        %789 = vmatprep.subr.mxu0 0.0
        %790 = vmatpush1.msra.mxu0 0.0
        %791 = vmatprep.subr.mxu0 0.0
        %792 = vmatpush1.msra.mxu0 0.0
        %793 = vmatprep.subr.mxu0 0.0
        %794 = vmatpush1.msra.mxu0 0.0
        %795 = vmatprep.subr.mxu0 0.0
        %796 = vmatpush1.msra.mxu0 0.0
        %797 = vmatprep.subr.mxu0 0.0
        %798 = vmatpush1.msra.mxu0 0.0
        %799 = vmatprep.subr.mxu0 0.0
        %800 = vmatpush1.msra.mxu0 0.0
        %801 = vmatprep.subr.mxu0 0.0
        %802 = vmatpush1.msra.mxu0 0.0
        %803 = vmatprep.subr.mxu0 0.0
        %804 = vmatpush1.msra.mxu0 0.0
        %805 = vmatprep.mubr.f32.mxu0 0.0
        %806 = vmatmul.mubr.f32.gmra.mrb[0].mxu0 %v730
        %v807 = vpop.f32.mrb[0].mxu0
        %v808 = vadd.f32 0.0, %v807
        %v809 = vpop.f32.mrb[0].mxu0
        %810 = vmatprep.mubr.f32.mxu0 0.0
        %811 = vmatmul.mubr.f32.gmra.mrb[0].mxu0 %v733
        %v812 = vpop.f32.mrb[0].mxu0
        %v813 = vadd.f32 0.0, %v812
        %v814 = vpop.f32.mrb[0].mxu0
        %815 = vmatprep.mubr.f32.mxu0 0.0
        %816 = vmatmul.mubr.f32.gmra.mrb[0].mxu0 %v736
        %v817 = vpop.f32.mrb[0].mxu0
        %v818 = vadd.f32 0.0, %v817
        %v819 = vpop.f32.mrb[0].mxu0
        %820 = vmatprep.mubr.f32.mxu0 0.0
        %821 = vmatmul.mubr.f32.gmra.mrb[0].mxu0 %v739
        %v822 = vpop.f32.mrb[0].mxu0
        %v823 = vadd.f32 0.0, %v822
        %v824 = vpop.f32.mrb[0].mxu0
        %825 = vdwg.mxu0
        %v826 = vadd.f32 %v808, %v711
        %v827 = vadd.f32 %v813, %v716
        %v828 = vadd.f32 %v818, %v721
        %v829 = vadd.f32 %v823, %v726
        %vm830 = vcmask 64512
        %v831 = vsel %vm830, %v826, -inf
        %v832 = vsel %vm830, %v827, -inf
        %v833 = vsel %vm830, %v828, -inf
        %v834 = vsel %vm830, %v829, -inf
        %v835 = vmax.f32 %v831, %v832
        %v836 = vmax.f32 %v833, %v834
        %v837 = vmax.f32 %v835, %v836
        %v838 = vsub.f32 %v826, %v837
        %v839 = vsub.f32 %v827, %v837
        %v840 = vsub.f32 %v828, %v837
        %v841 = vsub.f32 %v829, %v837
        %v842 = vmul.f32 %v838, 1.442695
        %v843 = vpow.pop %v842
        %v844 = vmul.f32 %v839, 1.442695
        %v845 = vpow.pop %v844
        %v846 = vmul.f32 %v840, 1.442695
        %v847 = vpow.pop %v846
        %v848 = vmul.f32 %v841, 1.442695
        %v849 = vpow.pop %v848
        %v850 = vsel %vm830, %v843, 0.0
        %v851 = vsel %vm830, %v845, 0.0
        %v852 = vadd.f32 %v850, %v851
        %v853 = vsel %vm830, %v847, 0.0
        %v854 = vadd.f32 %v852, %v853
        %v855 = vsel %vm830, %v849, 0.0
        %v856 = vadd.f32 %v854, %v855
        %v857 = vrcp.pop %v856
        %v858 = vmul.f32 %v843, %v857
        %v859 = vmul.f32 %v845, %v857
        %v860 = vmul.f32 %v847, %v857
        %v861 = vmul.f32 %v849, %v857
        %v862 = vadd.f32 %v858, 1.0
        %v863 = vadd.f32 %v859, 1.0
        %v864 = vadd.f32 %v860, 1.0
        %v865 = vadd.f32 %v861, 1.0
        %v866 = vmul.f32 %v626, %v862
        %v867 = vmul.f32 %v631, %v863
        %v868 = vmul.f32 %v636, %v864
        %v869 = vmul.f32 %v641, %v865
        %870 = vxpose.xlu0.b32.start [1/16] %v866, 128
        %871 = vxpose.xlu0.b32.cont [2/16] 0.0, 128
        %872 = vxpose.xlu0.b32.cont [3/16] 0.0, 128
        %873 = vxpose.xlu0.b32.cont [4/16] 0.0, 128
        %874 = vxpose.xlu0.b32.cont [5/16] 0.0, 128
        %875 = vxpose.xlu0.b32.cont [6/16] 0.0, 128
        %876 = vxpose.xlu0.b32.cont [7/16] 0.0, 128
        %877 = vxpose.xlu0.b32.cont [8/16] 0.0, 128
        %878 = vxpose.xlu0.b32.cont [9/16] 0.0, 128
        %879 = vxpose.xlu0.b32.cont [10/16] 0.0, 128
        %880 = vxpose.xlu0.b32.cont [11/16] 0.0, 128
        %881 = vxpose.xlu0.b32.cont [12/16] 0.0, 128
        %882 = vxpose.xlu0.b32.cont [13/16] 0.0, 128
        %883 = vxpose.xlu0.b32.cont [14/16] 0.0, 128
        %884 = vxpose.xlu0.b32.cont [15/16] 0.0, 128
        %885 = vxpose.xlu0.b32.end [16/16] 0.0, 128
        %v886 = vpop.trf.xlu0
        %v887 = vpop.trf.xlu0
        %v888 = vpop.trf.xlu0
        %v889 = vpop.trf.xlu0
        %v890 = vpop.trf.xlu0
        %v891 = vpop.trf.xlu0
        %v892 = vpop.trf.xlu0
        %v893 = vpop.trf.xlu0
        %v894 = vpop.trf.xlu0
        %v895 = vpop.trf.xlu0
        %v896 = vpop.trf.xlu0
        %v897 = vpop.trf.xlu0
        %v898 = vpop.trf.xlu0
        %v899 = vpop.trf.xlu0
        %v900 = vpop.trf.xlu0
        %v901 = vpop.trf.xlu0
        %902 = vxpose.xlu0.b32.start [1/16] %v867, 128
        %903 = vxpose.xlu0.b32.cont [2/16] 0.0, 128
        %904 = vxpose.xlu0.b32.cont [3/16] 0.0, 128
        %905 = vxpose.xlu0.b32.cont [4/16] 0.0, 128
        %906 = vxpose.xlu0.b32.cont [5/16] 0.0, 128
        %907 = vxpose.xlu0.b32.cont [6/16] 0.0, 128
        %908 = vxpose.xlu0.b32.cont [7/16] 0.0, 128
        %909 = vxpose.xlu0.b32.cont [8/16] 0.0, 128
        %910 = vxpose.xlu0.b32.cont [9/16] 0.0, 128
        %911 = vxpose.xlu0.b32.cont [10/16] 0.0, 128
        %912 = vxpose.xlu0.b32.cont [11/16] 0.0, 128
        %913 = vxpose.xlu0.b32.cont [12/16] 0.0, 128
        %914 = vxpose.xlu0.b32.cont [13/16] 0.0, 128
        %915 = vxpose.xlu0.b32.cont [14/16] 0.0, 128
        %916 = vxpose.xlu0.b32.cont [15/16] 0.0, 128
        %917 = vxpose.xlu0.b32.end [16/16] 0.0, 128
        %v918 = vpop.trf.xlu0
        %v919 = vpop.trf.xlu0
        %v920 = vpop.trf.xlu0
        %v921 = vpop.trf.xlu0
        %v922 = vpop.trf.xlu0
        %v923 = vpop.trf.xlu0
        %v924 = vpop.trf.xlu0
        %v925 = vpop.trf.xlu0
        %v926 = vpop.trf.xlu0
        %v927 = vpop.trf.xlu0
        %v928 = vpop.trf.xlu0
        %v929 = vpop.trf.xlu0
        %v930 = vpop.trf.xlu0
        %v931 = vpop.trf.xlu0
        %v932 = vpop.trf.xlu0
        %v933 = vpop.trf.xlu0
        %934 = vxpose.xlu0.b32.start [1/16] %v868, 128
        %935 = vxpose.xlu0.b32.cont [2/16] 0.0, 128
        %936 = vxpose.xlu0.b32.cont [3/16] 0.0, 128
        %937 = vxpose.xlu0.b32.cont [4/16] 0.0, 128
        %938 = vxpose.xlu0.b32.cont [5/16] 0.0, 128
        %939 = vxpose.xlu0.b32.cont [6/16] 0.0, 128
        %940 = vxpose.xlu0.b32.cont [7/16] 0.0, 128
        %941 = vxpose.xlu0.b32.cont [8/16] 0.0, 128
        %942 = vxpose.xlu0.b32.cont [9/16] 0.0, 128
        %943 = vxpose.xlu0.b32.cont [10/16] 0.0, 128
        %944 = vxpose.xlu0.b32.cont [11/16] 0.0, 128
        %945 = vxpose.xlu0.b32.cont [12/16] 0.0, 128
        %946 = vxpose.xlu0.b32.cont [13/16] 0.0, 128
        %947 = vxpose.xlu0.b32.cont [14/16] 0.0, 128
        %948 = vxpose.xlu0.b32.cont [15/16] 0.0, 128
        %949 = vxpose.xlu0.b32.end [16/16] 0.0, 128
        %v950 = vpop.trf.xlu0
        %v951 = vpop.trf.xlu0
        %v952 = vpop.trf.xlu0
        %v953 = vpop.trf.xlu0
        %v954 = vpop.trf.xlu0
        %v955 = vpop.trf.xlu0
        %v956 = vpop.trf.xlu0
        %v957 = vpop.trf.xlu0
        %v958 = vpop.trf.xlu0
        %v959 = vpop.trf.xlu0
        %v960 = vpop.trf.xlu0
        %v961 = vpop.trf.xlu0
        %v962 = vpop.trf.xlu0
        %v963 = vpop.trf.xlu0
        %v964 = vpop.trf.xlu0
        %v965 = vpop.trf.xlu0
        %966 = vxpose.xlu0.b32.start [1/16] %v869, 128
        %967 = vxpose.xlu0.b32.cont [2/16] 0.0, 128
        %968 = vxpose.xlu0.b32.cont [3/16] 0.0, 128
        %969 = vxpose.xlu0.b32.cont [4/16] 0.0, 128
        %970 = vxpose.xlu0.b32.cont [5/16] 0.0, 128
        %971 = vxpose.xlu0.b32.cont [6/16] 0.0, 128
        %972 = vxpose.xlu0.b32.cont [7/16] 0.0, 128
        %973 = vxpose.xlu0.b32.cont [8/16] 0.0, 128
        %974 = vxpose.xlu0.b32.cont [9/16] 0.0, 128
        %975 = vxpose.xlu0.b32.cont [10/16] 0.0, 128
        %976 = vxpose.xlu0.b32.cont [11/16] 0.0, 128
        %977 = vxpose.xlu0.b32.cont [12/16] 0.0, 128
        %978 = vxpose.xlu0.b32.cont [13/16] 0.0, 128
        %979 = vxpose.xlu0.b32.cont [14/16] 0.0, 128
        %980 = vxpose.xlu0.b32.cont [15/16] 0.0, 128
        %981 = vxpose.xlu0.b32.end [16/16] 0.0, 128
        %v982 = vpop.trf.xlu0
        %v983 = vpop.trf.xlu0
        %v984 = vpop.trf.xlu0
        %v985 = vpop.trf.xlu0
        %v986 = vpop.trf.xlu0
        %v987 = vpop.trf.xlu0
        %v988 = vpop.trf.xlu0
        %v989 = vpop.trf.xlu0
        %v990 = vpop.trf.xlu0
        %v991 = vpop.trf.xlu0
        %v992 = vpop.trf.xlu0
        %v993 = vpop.trf.xlu0
        %v994 = vpop.trf.xlu0
        %v995 = vpop.trf.xlu0
        %v996 = vpop.trf.xlu0
        %v997 = vpop.trf.xlu0
        %998 = vst.msk [vmem:[%s263] sm:$0xff] %vm830, %v886
        %999 = vst.msk [vmem:[%s263 + $0x8] sm:$0xff] %vm830, %v918
        %1000 = vst.msk [vmem:[%s263 + $0x10] sm:$0xff] %vm830, %v950
        %1001 = vst.msk [vmem:[%s263 + $0x18] sm:$0xff] %vm830, %v982
        %s1002 = sand.u32 %s144, 1
        %s1003 = scalar_lea.sflag [#allocation4], %s1002
        %s1004 = sand.u32 %s144, 1
        %s1005 = smul.addr %s1004, 32
        %s1006 = scalar_lea.vmem [#allocation5], %s1005
        // Predicated region
        $region41: #{tpu_custom_call.1} parent=35 // pred_check
          %p1007 = pneg %p154
        $region42: #{tpu_custom_call.1} parent=35 // pred_check_branch
          %1009 = sbr.rel (%p1007) target = $region44
        $region43: #{tpu_custom_call.1} parent=35 // pred_region
          %s1011 = ssub.s32 512, 512
          %1012 = vsyncadd %s1003, %s1011
          %s1013 = smul.addr %s25, 4
          %s1014 = sadd.s32 %s26, %s1013
          %s1015 = smul.addr %s1014, 128
          %s1016 = scalar_lea.hbm %s4, %s1015
          %s1017 = sshll.u32 %s1006, 4
          %s1018 = int_to_ptr.vmem [resolvable:$true] %s1017
          %1023 = dma.vmem_to_hbm [thread:$0]  %s1018, 512, %s1016, %s1003, 128, 128, 8
        $region44: #{tpu_custom_call.1} parent=35 // pred_fallthru
          _
      $region36: #{tpu_custom_call.1} parent=5 // pred_fallthru
        _
      %p1024 = scmp.le.s32.totalorder 2, %s16
      // Predicated region
      $region45: #{tpu_custom_call.1} parent=5 // pred_check
        %p1025 = pneg %p1024
      $region46: #{tpu_custom_call.1} parent=5 // pred_check_branch
        %1027 = sbr.rel (%p1025) target = $region48
      $region47: #{tpu_custom_call.1} parent=5 // pred_region
        %s1028 = ssub.s32 %s16, 2
        // Predicated region
        $region49: #{tpu_custom_call.1} parent=47 // pred_check
          %p1029 = pneg %p160
        $region50: #{tpu_custom_call.1} parent=47 // pred_check_branch
          %1031 = sbr.rel (%p1029) target = $region52
        $region51: #{tpu_custom_call.1} parent=47 // pred_region
          %s1032 = sand.u32 %s145, 1
          %s1033 = scalar_lea.sflag [#allocation4], %s1032
          %s1034 = sand.u32 %s145, 1
          %s1035 = smul.addr %s1034, 32
          %s1036 = scalar_lea.vmem [#allocation5], %s1035
          %1037 = dma.done %s1033, 512
        $region52: #{tpu_custom_call.1} parent=47 // pred_fallthru
          _
      $region48: #{tpu_custom_call.1} parent=5 // pred_fallthru
        _
    $region6: #{tpu_custom_call.1} parent=1 // loop_footer
      %s20 = sadd.s32 1, %s16
    $region7: #{tpu_custom_call.1} parent=1 // loop_footer_branch
      %15 = sbr.rel target = $region3
    $region8: #{tpu_custom_call.1} parent=1 // loop_exit
      _
    %1038 = vsyncpa [#allocation3], 1
    %s1039 = scalar_lea.sflag [#allocation3], 1
    %1040 = vsyncpa %s1039, 1
    %1041 = vsyncpa [#allocation4], 1
    %s1042 = scalar_lea.sflag [#allocation4], 1
    %1043 = vsyncpa %s1042, 1

</llo_original>
